<compile_context>
chip_gen: v7x
topology: tpu7x:2x2x1
jax: 0.10.0
libtpu: 0.0.40
codegen_flags: <defaults>
</compile_context>

<pallas_src>
import jax
import jax.numpy as jnp
from jax import lax
from jax.experimental import pallas as pl
from jax.experimental.pallas import tpu as pltpu


def _round_up(x, m):
    return (x + m - 1) // m * m


# ----------------------------------------------------------------------------
# Pallas kernel: fused  (sg @ W1_sg + ctxt_h) -> LayerNorm -> GELU -> (· w2 + b2)
# on a (tk, D) token tile of one batch element.
# ----------------------------------------------------------------------------
def _decoder_kernel(sg_ref, ch_ref, w1_ref, g_ref, beta_ref, w2_ref, b2_ref,
                    o_ref):
    # sg_ref:   (tk, D)  token tile of sg_emb (one batch element)
    # ch_ref:   (1, H)   precomputed ctxt_emb @ W1[D:] + b1 for this batch
    # w1_ref:   (D, H)   sg half of the first linear weight (VMEM resident)
    # g_ref/beta_ref: (1, H) LayerNorm affine
    # w2_ref:   (1, H)   second linear weight as a row
    # b2_ref:   (1, 1)   SMEM scalar bias
    # o_ref:    (1, tk)  lane-dense score tile
    x = sg_ref[...].astype(jnp.float32)                         # (tk, D)

    # Linear 1 (sg half) + folded ctxt half (already includes b1).
    h = jnp.dot(x, w1_ref[...].astype(jnp.float32),
                preferred_element_type=jnp.float32)             # (tk, H)
    h = h + ch_ref[...].astype(jnp.float32)

    # LayerNorm over the feature dim (torch default eps = 1e-5).
    mean = jnp.mean(h, axis=-1, keepdims=True)
    cent = h - mean
    var = jnp.mean(cent * cent, axis=-1, keepdims=True)
    hn = cent * lax.rsqrt(var + 1e-5)
    hn = hn * g_ref[...].astype(jnp.float32) + beta_ref[...].astype(jnp.float32)

    # GELU (exact erf form — torch nn.GELU default).
    act = 0.5 * hn * (1.0 + lax.erf(hn * 0.7071067811865475))

    # Dropout(p=0.0) -> identity.

    # Linear 2 (H -> 1) as (1,H) · (tk,H)^T so the result is already a
    # lane-major (1, tk) row; the H*tk contraction is negligible next to
    # Linear-1 and avoids a rank-1 sublane->lane relayout.
    out_row = lax.dot_general(
        w2_ref[...].astype(jnp.float32), act,
        dimension_numbers=(((1,), (1,)), ((), ())),
        preferred_element_type=jnp.float32)                      # (1, tk)
    out_row = out_row + b2_ref[0, 0]

    o_ref[...] = out_row.astype(o_ref.dtype)


# ----------------------------------------------------------------------------
# Wrapper: ctxt-projection folding, token-tiling / padding, pallas_call.
# ----------------------------------------------------------------------------
def decoder_forward(params, sg_emb, ctxt_emb, *, tk_max=512):
    """
    sg_emb:   (BS, k_max, D)   (f32 or bf16; kernel accumulates in f32)
    ctxt_emb: (BS, D)
    returns:  (BS, k_max) scores, f32
    """
    BS, k_max, D = sg_emb.shape
    w1 = params["w1"]                      # (2D, H), torch-style layout
    H = w1.shape[1]
    w1_sg = w1[:D]                         # (D, H)
    w1_ctxt = w1[D:]                       # (D, H)

    # Fold the ctxt half of Linear-1 (+ b1) out of the hot loop: (BS, 1, H).
    ctxt_h = (jnp.dot(ctxt_emb.astype(jnp.float32), w1_ctxt,
                      precision=lax.Precision.HIGHEST)
              + params["b1"]).reshape(BS, 1, H)

    # Token-tile selection: largest tile up to tk_max; pad k_max so every
    # shape is legal (no divisibility assert).  tk_max is a multiple of 128
    # so the lane-dense output block is always (8,128)-friendly.
    tk = min(tk_max, _round_up(k_max, 8))
    Kp = _round_up(k_max, tk)
    sg = sg_emb
    if Kp != k_max:
        sg = jnp.pad(sg, ((0, 0), (0, Kp - k_max), (0, 0)))

    w2_row = params["w2"].reshape(1, H)    # (1, H)
    b2 = params["b2"].reshape(1, 1)        # SMEM scalar

    grid = (BS, Kp // tk)
    out = pl.pallas_call(
        _decoder_kernel,
        out_shape=jax.ShapeDtypeStruct((BS, 1, Kp), jnp.float32),
        grid_spec=pltpu.PrefetchScalarGridSpec(
            num_scalar_prefetch=0,
            grid=grid,
            in_specs=[
                pl.BlockSpec((None, tk, D), lambda b, j: (b, j, 0)),  # sg tile
                pl.BlockSpec((None, 1, H), lambda b, j: (b, 0, 0)),   # ctxt_h
                pl.BlockSpec((D, H), lambda b, j: (0, 0)),            # w1_sg
                pl.BlockSpec((1, H), lambda b, j: (0, 0)),            # ln gamma
                pl.BlockSpec((1, H), lambda b, j: (0, 0)),            # ln beta
                pl.BlockSpec((1, H), lambda b, j: (0, 0)),            # w2 row
                pl.BlockSpec(memory_space=pltpu.MemorySpace.SMEM),    # b2
            ],
            out_specs=pl.BlockSpec((None, 1, tk), lambda b, j: (b, 0, j)),
        ),
        compiler_params=pltpu.CompilerParams(
            dimension_semantics=("parallel", "parallel")),
    )(sg, ctxt_h, w1_sg, params["ln_gamma"], params["ln_beta"], w2_row, b2)

    return out.reshape(BS, Kp)[:, :k_max]


# ----------------------------------------------------------------------------
# Parameters + pure-JAX reference.
# ----------------------------------------------------------------------------
def init_params(key, emb_dim, hidden_dim):
    """Deterministic synthetic parameters matching the module's shapes."""
    din = 2 * emb_dim  # comb_mode == 'cat'
    k1, k2, k3, k4 = jax.random.split(key, 4)
    return {
        "w1": (jax.random.normal(k1, (din, hidden_dim), jnp.float32)
               * (1.0 / jnp.sqrt(din))),
        "b1": jax.random.normal(k2, (1, hidden_dim), jnp.float32) * 0.01,
        "ln_gamma": jnp.ones((1, hidden_dim), jnp.float32),
        "ln_beta": jnp.zeros((1, hidden_dim), jnp.float32),
        "w2": (jax.random.normal(k3, (hidden_dim, 1), jnp.float32)
               * (1.0 / jnp.sqrt(hidden_dim))),
        "b2": jax.random.normal(k4, (1, 1), jnp.float32) * 0.01,
    }


def decoder_forward_ref(params, sg_emb, ctxt_emb):
    """Pure-JAX reference (cat + full MLP), f32, high-precision matmuls."""
    BS, k_max, D = sg_emb.shape
    ctxt_b = jnp.broadcast_to(ctxt_emb[:, None, :], (BS, k_max, D))
    x = jnp.concatenate([sg_emb, ctxt_b], axis=-1).reshape(BS * k_max, 2 * D)
    x = x.astype(jnp.float32)
    h = jnp.dot(x, params["w1"], precision=lax.Precision.HIGHEST) + params["b1"]
    mean = h.mean(-1, keepdims=True)
    var = ((h - mean) ** 2).mean(-1, keepdims=True)
    hn = (h - mean) * lax.rsqrt(var + 1e-5)
    hn = hn * params["ln_gamma"] + params["ln_beta"]
    act = 0.5 * hn * (1.0 + lax.erf(hn / jnp.sqrt(2.0)))
    out = jnp.dot(act, params["w2"], precision=lax.Precision.HIGHEST) + params["b2"]
    return out.reshape(BS, k_max)


# ----------------------------------------------------------------------------
# Self-test.
# ----------------------------------------------------------------------------
def _run_case(key, BS, K_MAX, EMB_DIM, HIDDEN):
    kp, ks, kc = jax.random.split(key, 3)
    params = init_params(kp, EMB_DIM, HIDDEN)
    sg_emb = jax.random.normal(ks, (BS, K_MAX, EMB_DIM), jnp.float32)
    ctxt_emb = jax.random.normal(kc, (BS, EMB_DIM), jnp.float32)

    scores = decoder_forward(params, sg_emb, ctxt_emb)
    scores = jax.block_until_ready(scores)

    ref = decoder_forward_ref(params, sg_emb, ctxt_emb)
    assert scores.shape == (BS, K_MAX), scores.shape
    max_err = float(jnp.max(jnp.abs(scores - ref)))
    assert jnp.allclose(scores, ref, atol=1e-4, rtol=1e-4), max_err


if __name__ == "__main__":
    # Small shapes consistent with the forward signature:
    #   sg_emb (BS=2, k_max=8, D=16), ctxt_emb (BS=2, D=16), hidden=32.
    _run_case(jax.random.PRNGKey(0), BS=2, K_MAX=8, EMB_DIM=16, HIDDEN=32)

    # Exercise padding + multi-tile grid + lane-dense output path
    # (k_max not a multiple of the 512-token tile).
    _run_case(jax.random.PRNGKey(1), BS=2, K_MAX=1100, EMB_DIM=32, HIDDEN=128)

    print("KERNEL_OK")
</pallas_src>

<mosaic_0001>
module attributes {stable_mosaic.version = 11 : i64} {
  func.func @_decoder_kernel(%arg0: i32, %arg1: i32, %arg2: memref<1x8x16xf32, #tpu.memory_space<vmem>>, %arg3: memref<1x1x32xf32, #tpu.memory_space<vmem>>, %arg4: memref<16x32xf32, #tpu.memory_space<vmem>>, %arg5: memref<1x32xf32, #tpu.memory_space<vmem>>, %arg6: memref<1x32xf32, #tpu.memory_space<vmem>>, %arg7: memref<1x32xf32, #tpu.memory_space<vmem>>, %arg8: memref<1x1xf32, #tpu.memory_space<smem>>, %arg9: memref<1x1x8xf32, #tpu.memory_space<vmem>>) attributes {dimension_semantics = [#tpu.dimension_semantics<parallel>, #tpu.dimension_semantics<parallel>], iteration_bounds = array<i64: 2, 1>, scalar_prefetch = 0 : i64, scratch_operands = 0 : i64, tpu.core_type = #tpu.core_type<tc>, window_params = [{transform_indices = @transform_0, window_bounds = array<i64: 1, 8, 16>}, {transform_indices = @transform_1, window_bounds = array<i64: 1, 1, 32>}, {pipeline_mode = #tpu.pipeline_mode<synchronous>, transform_indices = @transform_2, window_bounds = array<i64: 16, 32>}, {pipeline_mode = #tpu.pipeline_mode<synchronous>, transform_indices = @transform_3, window_bounds = array<i64: 1, 32>}, {pipeline_mode = #tpu.pipeline_mode<synchronous>, transform_indices = @transform_4, window_bounds = array<i64: 1, 32>}, {pipeline_mode = #tpu.pipeline_mode<synchronous>, transform_indices = @transform_5, window_bounds = array<i64: 1, 32>}, {transform_indices = @transform_6, window_bounds = array<i64: 1, 1>}, {transform_indices = @transform_7, window_bounds = array<i64: 1, 1, 8>}]} {
    %c0 = arith.constant 0 : index
    %c0_0 = arith.constant 0 : index
    %c0_1 = arith.constant 0 : index
    %0 = vector.load %arg2[%c0, %c0_0, %c0_1] : memref<1x8x16xf32, #tpu.memory_space<vmem>>, vector<1x8x16xf32>
    %1 = vector.shape_cast %0 : vector<1x8x16xf32> to vector<8x16xf32>
    %c0_2 = arith.constant 0 : index
    %c0_3 = arith.constant 0 : index
    %2 = vector.load %arg4[%c0_2, %c0_3] : memref<16x32xf32, #tpu.memory_space<vmem>>, vector<16x32xf32>
    %cst = arith.constant dense<0.000000e+00> : vector<8x32xf32>
    %3 = tpu.matmul %1, %2, %cst {dimension_numbers = #tpu.dot_dimension_numbers<[1], [0], [0], [1], [0, 0, 1, 1], [], []>} : vector<8x16xf32>, vector<16x32xf32>, vector<8x32xf32> -> vector<8x32xf32>
    %c0_4 = arith.constant 0 : index
    %c0_5 = arith.constant 0 : index
    %c0_6 = arith.constant 0 : index
    %4 = vector.load %arg3[%c0_4, %c0_5, %c0_6] : memref<1x1x32xf32, #tpu.memory_space<vmem>>, vector<1x1x32xf32>
    %5 = vector.shape_cast %4 : vector<1x1x32xf32> to vector<1x32xf32>
    %6 = vector.broadcast %5 : vector<1x32xf32> to vector<8x32xf32>
    %7 = arith.addf %3, %6 : vector<8x32xf32>
    %cst_7 = arith.constant dense<0.000000e+00> : vector<8xf32>
    %8 = vector.multi_reduction <add>, %7, %cst_7 [1] : vector<8x32xf32> to vector<8xf32>
    %9 = vector.shape_cast %8 : vector<8xf32> to vector<8x1xf32>
    %cst_8 = arith.constant 3.200000e+01 : f32
    %10 = vector.broadcast %cst_8 : f32 to vector<8x1xf32>
    %11 = arith.divf %9, %10 : vector<8x1xf32>
    %12 = vector.broadcast %11 : vector<8x1xf32> to vector<8x32xf32>
    %13 = arith.subf %7, %12 : vector<8x32xf32>
    %14 = arith.mulf %13, %13 : vector<8x32xf32>
    %cst_9 = arith.constant dense<0.000000e+00> : vector<8xf32>
    %15 = vector.multi_reduction <add>, %14, %cst_9 [1] : vector<8x32xf32> to vector<8xf32>
    %16 = vector.shape_cast %15 : vector<8xf32> to vector<8x1xf32>
    %cst_10 = arith.constant 3.200000e+01 : f32
    %17 = vector.broadcast %cst_10 : f32 to vector<8x1xf32>
    %18 = arith.divf %16, %17 : vector<8x1xf32>
    %cst_11 = arith.constant 9.99999974E-6 : f32
    %19 = vector.broadcast %cst_11 : f32 to vector<8x1xf32>
    %20 = arith.addf %18, %19 : vector<8x1xf32>
    %21 = math.rsqrt %20 : vector<8x1xf32>
    %22 = vector.broadcast %21 : vector<8x1xf32> to vector<8x32xf32>
    %23 = arith.mulf %13, %22 : vector<8x32xf32>
    %c0_12 = arith.constant 0 : index
    %c0_13 = arith.constant 0 : index
    %24 = vector.load %arg5[%c0_12, %c0_13] : memref<1x32xf32, #tpu.memory_space<vmem>>, vector<1x32xf32>
    %25 = vector.broadcast %24 : vector<1x32xf32> to vector<8x32xf32>
    %26 = arith.mulf %23, %25 : vector<8x32xf32>
    %c0_14 = arith.constant 0 : index
    %c0_15 = arith.constant 0 : index
    %27 = vector.load %arg6[%c0_14, %c0_15] : memref<1x32xf32, #tpu.memory_space<vmem>>, vector<1x32xf32>
    %28 = vector.broadcast %27 : vector<1x32xf32> to vector<8x32xf32>
    %29 = arith.addf %26, %28 : vector<8x32xf32>
    %cst_16 = arith.constant 5.000000e-01 : f32
    %30 = vector.broadcast %cst_16 : f32 to vector<8x32xf32>
    %31 = arith.mulf %30, %29 : vector<8x32xf32>
    %cst_17 = arith.constant 0.707106769 : f32
    %32 = vector.broadcast %cst_17 : f32 to vector<8x32xf32>
    %33 = arith.mulf %29, %32 : vector<8x32xf32>
    %34 = math.erf %33 : vector<8x32xf32>
    %cst_18 = arith.constant 1.000000e+00 : f32
    %35 = vector.broadcast %cst_18 : f32 to vector<8x32xf32>
    %36 = arith.addf %35, %34 : vector<8x32xf32>
    %37 = arith.mulf %31, %36 : vector<8x32xf32>
    %c0_19 = arith.constant 0 : index
    %c0_20 = arith.constant 0 : index
    %38 = vector.load %arg7[%c0_19, %c0_20] : memref<1x32xf32, #tpu.memory_space<vmem>>, vector<1x32xf32>
    %cst_21 = arith.constant dense<0.000000e+00> : vector<1x8xf32>
    %39 = tpu.matmul %38, %37, %cst_21 {dimension_numbers = #tpu.dot_dimension_numbers<[1], [1], [0], [0], [0, 0, 1, 0], [], []>} : vector<1x32xf32>, vector<8x32xf32>, vector<1x8xf32> -> vector<1x8xf32>
    %c0_22 = arith.constant 0 : index
    %c0_23 = arith.constant 0 : index
    %40 = memref.load %arg8[%c0_22, %c0_23] : memref<1x1xf32, #tpu.memory_space<smem>>
    %41 = vector.broadcast %40 : f32 to vector<1x8xf32>
    %42 = arith.addf %39, %41 : vector<1x8xf32>
    %c0_24 = arith.constant 0 : index
    %c0_25 = arith.constant 0 : index
    %c0_26 = arith.constant 0 : index
    %43 = vector.load %arg9[%c0_24, %c0_25, %c0_26] : memref<1x1x8xf32, #tpu.memory_space<vmem>>, vector<1x1x8xf32>
    %44 = vector.shape_cast %43 : vector<1x1x8xf32> to vector<1x8xf32>
    %45 = vector.shape_cast %42 : vector<1x8xf32> to vector<1x1x8xf32>
    tpu.vector_store %arg9[%c0_24, %c0_25, %c0_26], %45 {strides = array<i32>} : memref<1x1x8xf32, #tpu.memory_space<vmem>>, vector<1x1x8xf32>,
    return
  }
  func.func @transform_0(%arg0: i32, %arg1: i32) -> (i32, i32, i32) {
    %c0_i32 = arith.constant 0 : i32
    %c0_i32_0 = arith.constant 0 : i32
    return %arg0, %arg1, %c0_i32 : i32, i32, i32
  }
  func.func @transform_1(%arg0: i32, %arg1: i32) -> (i32, i32, i32) {
    %c0_i32 = arith.constant 0 : i32
    %c0_i32_0 = arith.constant 0 : i32
    %c0_i32_1 = arith.constant 0 : i32
    return %arg0, %c0_i32, %c0_i32_0 : i32, i32, i32
  }
  func.func @transform_2(%arg0: i32, %arg1: i32) -> (i32, i32) {
    %c0_i32 = arith.constant 0 : i32
    %c0_i32_0 = arith.constant 0 : i32
    %c0_i32_1 = arith.constant 0 : i32
    return %c0_i32, %c0_i32_0 : i32, i32
  }
  func.func @transform_3(%arg0: i32, %arg1: i32) -> (i32, i32) {
    %c0_i32 = arith.constant 0 : i32
    %c0_i32_0 = arith.constant 0 : i32
    %c0_i32_1 = arith.constant 0 : i32
    return %c0_i32, %c0_i32_0 : i32, i32
  }
  func.func @transform_4(%arg0: i32, %arg1: i32) -> (i32, i32) {
    %c0_i32 = arith.constant 0 : i32
    %c0_i32_0 = arith.constant 0 : i32
    %c0_i32_1 = arith.constant 0 : i32
    return %c0_i32, %c0_i32_0 : i32, i32
  }
  func.func @transform_5(%arg0: i32, %arg1: i32) -> (i32, i32) {
    %c0_i32 = arith.constant 0 : i32
    %c0_i32_0 = arith.constant 0 : i32
    %c0_i32_1 = arith.constant 0 : i32
    return %c0_i32, %c0_i32_0 : i32, i32
  }
  func.func @transform_6(%arg0: i32, %arg1: i32) -> (i32, i32) {
    %c0_i32 = arith.constant 0 : i32
    %c0_i32_0 = arith.constant 0 : i32
    %c0_i32_1 = arith.constant 0 : i32
    return %c0_i32, %c0_i32_0 : i32, i32
  }
  func.func @transform_7(%arg0: i32, %arg1: i32) -> (i32, i32, i32) {
    %c0_i32 = arith.constant 0 : i32
    %c0_i32_0 = arith.constant 0 : i32
    return %arg0, %c0_i32, %arg1 : i32, i32, i32
  }
}

</mosaic_0001>

<llo_original>
// kernel: tpu_custom_call.1
$region0: #{tpu_custom_call.1}
  #allocation0 [shape = 'u32[]', space=smem, size = 0x4, offset = 0x4, fixed_abs, tag = 'smem constant byte address 0x4 - core index']
  #allocation1 [shape = 'u32[144,128]{1,0:T(1,128)}', space=vmem, size = 0x12000, scoped, tag = 'internal scratch']
  #allocation2 [shape = 'f32[1,1]{1,0:T(1,128)S(6)}', space=smem, size = 0x200, scoped, tag = 'scoped memory for tpu_custom_call.1']
  %s0 = inlined_call_operand.hbm [shape: f32[2,8,16], index: 0, kind: input, shape index: {}]
  %s1 = inlined_call_operand.vmem [shape: f32[2,1,32], index: 1, kind: input, shape index: {}]
  %s2 = inlined_call_operand.hbm [shape: f32[16,32], index: 2, kind: input, shape index: {}]
  %s3 = inlined_call_operand.vmem [shape: f32[1,32], index: 3, kind: input, shape index: {}]
  %s4 = inlined_call_operand.vmem [shape: f32[1,32], index: 4, kind: input, shape index: {}]
  %s5 = inlined_call_operand.vmem [shape: f32[1,32], index: 5, kind: input, shape index: {}]
  %s6 = inlined_call_operand.<no memory space> [shape: f32[1,1], index: 6, kind: input, shape index: {}]
  %s7 = inlined_call_operand.hbm [shape: f32[2,1,8], index: 7, kind: output, shape index: {}]
  %s8 = sld [smem:[#allocation0]]
  $region69: #{tpu_custom_call.1} parent=0
    _
  %s10 = ssub.s32 1, %s8
  %s11 = scalar_select 0, %s10, %s8
  %12 = sst [smem:[#allocation2]] %s6
  $region1: #{tpu_custom_call.1} parent=0
    #allocation3 [shape = 'u8[8192]{0}', space=vmem, size = 0x2000, scoped, tag = 'input window, operand 0']
    #allocation4 [shape = 's32[2]{0}', space=sflag, size = 0x8, scoped, tag = 'scoped memory for tpu_custom_call.1']
    #allocation5 [shape = 's32[2]{0}', space=sflag, size = 0x8, scoped, tag = 'scoped memory for tpu_custom_call.1']
    #allocation6 [shape = 'u8[8192]{0}', space=vmem, size = 0x2000, scoped, tag = 'input window, operand 2, single buffered']
    #allocation7 [shape = 's32[1]{0}', space=sflag, size = 0x4, scoped, tag = 'scoped memory for tpu_custom_call.1']
    #allocation8 [shape = 'u8[1024]{0}', space=vmem, size = 0x400, scoped, tag = 'output window, operand 0']
    %13 = vsyncpa [#allocation4], 0
    %s14 = scalar_lea.sflag [#allocation4], 1
    %15 = vsyncpa %s14, 0
    %16 = vsyncpa [#allocation7], 0
    %17 = vsyncpa [#allocation5], 0
    %s18 = scalar_lea.sflag [#allocation5], 1
    %19 = vsyncpa %s18, 0
    loop: start=0, step=1, limit=4
    $region2: #{tpu_custom_call.1} parent=1 // loop_pre_header
      _
    $region3: #{tpu_custom_call.1} parent=1 // loop_header
      %s21 = sphi 0, %s25
      %p22 = scmp.ge.s32.totalorder %s21, 4
      %s28 = sphi 0, %s40
      %s29 = sphi 0, %s36
      %s30 = sphi 0, %s28
      %s31 = sphi 0, %s29
      %s32 = sphi 0, %s30
      %s33 = sphi 0, %s31
      %s45 = sphi 0, %s47
      %s48 = sphi 0, %s45
      %s49 = sphi 0, %s48
      %s65 = sphi 0, %s49
      %s71 = sphi 0, %s73
      %s74 = sphi 0, %s71
      %s75 = sphi 0, %s74
      %s91 = sphi 0, %s75
      %s95 = sphi 0, %s95
      %s97 = sphi 0, %s95
      %s98 = sphi 0, %s97
      %s112 = sphi 0, %s98
      %s116 = sphi 0, %s116
      %s118 = sphi 0, %s116
      %s119 = sphi 0, %s118
      %s133 = sphi 0, %s119
      %s137 = sphi 0, %s137
      %s139 = sphi 0, %s137
      %s140 = sphi 0, %s139
      %s154 = sphi 0, %s140
      %s158 = sphi 0, %s158
      %s160 = sphi 0, %s158
      %s161 = sphi 0, %s160
      %s175 = sphi 0, %s161
      %s179 = sphi 0, %s179
      %s181 = sphi 0, %s179
      %s182 = sphi 0, %s181
      %s196 = sphi 0, %s182
      %s204 = sphi 0, %s206
      %s207 = sphi 0, %s204
      %s208 = sphi 0, %s207
      %s224 = sphi 0, %s208
    $region4: #{tpu_custom_call.1} parent=1 // loop_header_branch
      %24 = sbr.rel (%p22) target = $region8
    $region5: #{tpu_custom_call.1} parent=1 // loop_body
      %s26 = ssub.s32 %s21, 1
      %s27 = ssub.s32 %s21, 2
      %s34 = sadd.s32 1, %s29
      %p35 = scmp.ge.s32.totalorder %s34, 1
      %s36 = scalar_select %p35, 0, %s34
      %s37 = sadd.s32 1, %s28
      %s38 = scalar_select %p35, %s37, %s28
      %p39 = scmp.ge.s32.totalorder %s38, 2
      %s40 = scalar_select %p39, 0, %s38
      %s41 = ssub.s32 %s28, %s40
      %s42 = ssub.s32 %s29, %s36
      %s43 = sor.u32 %s41, %s42
      %p44 = scmp.eq.s32.totalorder %s43, 0
      %s46 = sadd.s32 %s45, 1
      %s47 = scalar_select %p44, %s45, %s46
      %p50 = pneg %p44
      %p51 = scmp.eq.s32.totalorder %s21, 1
      %p52 = por %p50, %p51
      %p53 = scmp.ne.s32.totalorder %s45, %s48
      %p54 = scmp.eq.s32.totalorder %s21, 0
      %p55 = por %p53, %p54
      %p56 = scmp.ne.s32.totalorder %s45, %s48
      %p57 = scmp.eq.s32.totalorder %s26, 1
      %p58 = por %p56, %p57
      %p59 = scmp.ne.s32.totalorder %s48, %s49
      %p60 = scmp.eq.s32.totalorder %s26, 0
      %p61 = por %p59, %p60
      %p62 = scmp.ne.s32.totalorder %s48, %s49
      %p63 = scmp.eq.s32.totalorder %s27, 1
      %p64 = por %p62, %p63
      %p66 = scmp.ne.s32.totalorder %s49, %s65
      %p67 = scmp.eq.s32.totalorder %s27, 0
      %p68 = por %p66, %p67
      %s69 = ssub.s32 %s28, %s40
      %p70 = scmp.eq.s32.totalorder %s69, 0
      %s72 = sadd.s32 %s71, 1
      %s73 = scalar_select %p70, %s71, %s72
      %p76 = pneg %p70
      %p77 = scmp.eq.s32.totalorder %s21, 1
      %p78 = por %p76, %p77
      %p79 = scmp.ne.s32.totalorder %s71, %s74
      %p80 = scmp.eq.s32.totalorder %s21, 0
      %p81 = por %p79, %p80
      %p82 = scmp.ne.s32.totalorder %s71, %s74
      %p83 = scmp.eq.s32.totalorder %s26, 1
      %p84 = por %p82, %p83
      %p85 = scmp.ne.s32.totalorder %s74, %s75
      %p86 = scmp.eq.s32.totalorder %s26, 0
      %p87 = por %p85, %p86
      %p88 = scmp.ne.s32.totalorder %s74, %s75
      %p89 = scmp.eq.s32.totalorder %s27, 1
      %p90 = por %p88, %p89
      %p92 = scmp.ne.s32.totalorder %s75, %s91
      %p93 = scmp.eq.s32.totalorder %s27, 0
      %p94 = por %p92, %p93
      %s96 = sadd.s32 %s95, 1
      %p99 = scmp.eq.s32.totalorder %s21, 1
      %p100 = scmp.ne.s32.totalorder %s95, %s97
      %p101 = scmp.eq.s32.totalorder %s21, 0
      %p102 = por %p100, %p101
      %p103 = scmp.ne.s32.totalorder %s95, %s97
      %p104 = scmp.eq.s32.totalorder %s26, 1
      %p105 = por %p103, %p104
      %p106 = scmp.ne.s32.totalorder %s97, %s98
      %p107 = scmp.eq.s32.totalorder %s26, 0
      %p108 = por %p106, %p107
      %p109 = scmp.ne.s32.totalorder %s97, %s98
      %p110 = scmp.eq.s32.totalorder %s27, 1
      %p111 = por %p109, %p110
      %p113 = scmp.ne.s32.totalorder %s98, %s112
      %p114 = scmp.eq.s32.totalorder %s27, 0
      %p115 = por %p113, %p114
      %s117 = sadd.s32 %s116, 1
      %p120 = scmp.eq.s32.totalorder %s21, 1
      %p121 = scmp.ne.s32.totalorder %s116, %s118
      %p122 = scmp.eq.s32.totalorder %s21, 0
      %p123 = por %p121, %p122
      %p124 = scmp.ne.s32.totalorder %s116, %s118
      %p125 = scmp.eq.s32.totalorder %s26, 1
      %p126 = por %p124, %p125
      %p127 = scmp.ne.s32.totalorder %s118, %s119
      %p128 = scmp.eq.s32.totalorder %s26, 0
      %p129 = por %p127, %p128
      %p130 = scmp.ne.s32.totalorder %s118, %s119
      %p131 = scmp.eq.s32.totalorder %s27, 1
      %p132 = por %p130, %p131
      %p134 = scmp.ne.s32.totalorder %s119, %s133
      %p135 = scmp.eq.s32.totalorder %s27, 0
      %p136 = por %p134, %p135
      %s138 = sadd.s32 %s137, 1
      %p141 = scmp.eq.s32.totalorder %s21, 1
      %p142 = scmp.ne.s32.totalorder %s137, %s139
      %p143 = scmp.eq.s32.totalorder %s21, 0
      %p144 = por %p142, %p143
      %p145 = scmp.ne.s32.totalorder %s137, %s139
      %p146 = scmp.eq.s32.totalorder %s26, 1
      %p147 = por %p145, %p146
      %p148 = scmp.ne.s32.totalorder %s139, %s140
      %p149 = scmp.eq.s32.totalorder %s26, 0
      %p150 = por %p148, %p149
      %p151 = scmp.ne.s32.totalorder %s139, %s140
      %p152 = scmp.eq.s32.totalorder %s27, 1
      %p153 = por %p151, %p152
      %p155 = scmp.ne.s32.totalorder %s140, %s154
      %p156 = scmp.eq.s32.totalorder %s27, 0
      %p157 = por %p155, %p156
      %s159 = sadd.s32 %s158, 1
      %p162 = scmp.eq.s32.totalorder %s21, 1
      %p163 = scmp.ne.s32.totalorder %s158, %s160
      %p164 = scmp.eq.s32.totalorder %s21, 0
      %p165 = por %p163, %p164
      %p166 = scmp.ne.s32.totalorder %s158, %s160
      %p167 = scmp.eq.s32.totalorder %s26, 1
      %p168 = por %p166, %p167
      %p169 = scmp.ne.s32.totalorder %s160, %s161
      %p170 = scmp.eq.s32.totalorder %s26, 0
      %p171 = por %p169, %p170
      %p172 = scmp.ne.s32.totalorder %s160, %s161
      %p173 = scmp.eq.s32.totalorder %s27, 1
      %p174 = por %p172, %p173
      %p176 = scmp.ne.s32.totalorder %s161, %s175
      %p177 = scmp.eq.s32.totalorder %s27, 0
      %p178 = por %p176, %p177
      %s180 = sadd.s32 %s179, 1
      %p183 = scmp.eq.s32.totalorder %s21, 1
      %p184 = scmp.ne.s32.totalorder %s179, %s181
      %p185 = scmp.eq.s32.totalorder %s21, 0
      %p186 = por %p184, %p185
      %p187 = scmp.ne.s32.totalorder %s179, %s181
      %p188 = scmp.eq.s32.totalorder %s26, 1
      %p189 = por %p187, %p188
      %p190 = scmp.ne.s32.totalorder %s181, %s182
      %p191 = scmp.eq.s32.totalorder %s26, 0
      %p192 = por %p190, %p191
      %p193 = scmp.ne.s32.totalorder %s181, %s182
      %p194 = scmp.eq.s32.totalorder %s27, 1
      %p195 = por %p193, %p194
      %p197 = scmp.ne.s32.totalorder %s182, %s196
      %p198 = scmp.eq.s32.totalorder %s27, 0
      %p199 = por %p197, %p198
      %s200 = ssub.s32 %s28, %s40
      %s201 = ssub.s32 %s29, %s36
      %s202 = sor.u32 %s200, %s201
      %p203 = scmp.eq.s32.totalorder %s202, 0
      %s205 = sadd.s32 %s204, 1
      %s206 = scalar_select %p203, %s204, %s205
      %p209 = pneg %p203
      %p210 = scmp.eq.s32.totalorder %s21, 1
      %p211 = por %p209, %p210
      %p212 = scmp.ne.s32.totalorder %s204, %s207
      %p213 = scmp.eq.s32.totalorder %s21, 0
      %p214 = por %p212, %p213
      %p215 = scmp.ne.s32.totalorder %s204, %s207
      %p216 = scmp.eq.s32.totalorder %s26, 1
      %p217 = por %p215, %p216
      %p218 = scmp.ne.s32.totalorder %s207, %s208
      %p219 = scmp.eq.s32.totalorder %s26, 0
      %p220 = por %p218, %p219
      %p221 = scmp.ne.s32.totalorder %s207, %s208
      %p222 = scmp.eq.s32.totalorder %s27, 1
      %p223 = por %p221, %p222
      %p225 = scmp.ne.s32.totalorder %s208, %s224
      %p226 = scmp.eq.s32.totalorder %s27, 0
      %p227 = por %p225, %p226
      %p228 = scmp.le.s32.totalorder 1, %s21
      %p229 = scmp.lt.s32.totalorder %s21, 3
      %p230 = pnand %p228, %p229
      %p231 = pneg %p230
      // Predicated region
      $region9: #{tpu_custom_call.1} parent=5 // pred_check
        _
      $region10: #{tpu_custom_call.1} parent=5 // pred_check_branch
        %233 = sbr.rel (%p230) target = $region12
      $region11: #{tpu_custom_call.1} parent=5 // pred_region
        %s234 = ssub.s32 %s21, 1
        // Predicated region
        $region13: #{tpu_custom_call.1} parent=11 // pred_check
          %p235 = pneg %p108
        $region14: #{tpu_custom_call.1} parent=11 // pred_check_branch
          %237 = sbr.rel (%p235) target = $region16
        $region15: #{tpu_custom_call.1} parent=11 // pred_region
          %s239 = ssub.s32 256, 256
          %240 = vsyncadd [#allocation7], %s239
          %s241 = sshll.u32 [#allocation6], 4
          %s242 = int_to_ptr.vmem [resolvable:$true] %s241
          %247 = dma.hbm_to_vmem [thread:$0]  %s2, 256, %s242, [#allocation7], 128, 128, 8
        $region16: #{tpu_custom_call.1} parent=11 // pred_fallthru
          _
        // Predicated region
        $region17: #{tpu_custom_call.1} parent=11 // pred_check
          %p248 = pneg %p129
        $region18: #{tpu_custom_call.1} parent=11 // pred_check_branch
          %250 = sbr.rel (%p248) target = $region20
        $region19: #{tpu_custom_call.1} parent=11 // pred_region
          _
        $region20: #{tpu_custom_call.1} parent=11 // pred_fallthru
          _
        // Predicated region
        $region21: #{tpu_custom_call.1} parent=11 // pred_check
          %p251 = pneg %p150
        $region22: #{tpu_custom_call.1} parent=11 // pred_check_branch
          %253 = sbr.rel (%p251) target = $region24
        $region23: #{tpu_custom_call.1} parent=11 // pred_region
          _
        $region24: #{tpu_custom_call.1} parent=11 // pred_fallthru
          _
        // Predicated region
        $region25: #{tpu_custom_call.1} parent=11 // pred_check
          %p254 = pneg %p171
        $region26: #{tpu_custom_call.1} parent=11 // pred_check_branch
          %256 = sbr.rel (%p254) target = $region28
        $region27: #{tpu_custom_call.1} parent=11 // pred_region
          _
        $region28: #{tpu_custom_call.1} parent=11 // pred_fallthru
          _
        // Predicated region
        $region29: #{tpu_custom_call.1} parent=11 // pred_check
          %p257 = pneg %p192
        $region30: #{tpu_custom_call.1} parent=11 // pred_check_branch
          %259 = sbr.rel (%p257) target = $region32
        $region31: #{tpu_custom_call.1} parent=11 // pred_region
          _
        $region32: #{tpu_custom_call.1} parent=11 // pred_fallthru
          _
      $region12: #{tpu_custom_call.1} parent=5 // pred_fallthru
        _
      %p260 = scmp.lt.s32.totalorder %s21, 2
      // Predicated region
      $region33: #{tpu_custom_call.1} parent=5 // pred_check
        %p261 = pneg %p260
      $region34: #{tpu_custom_call.1} parent=5 // pred_check_branch
        %263 = sbr.rel (%p261) target = $region36
      $region35: #{tpu_custom_call.1} parent=5 // pred_region
        // Predicated region
        $region37: #{tpu_custom_call.1} parent=35 // pred_check
          %p264 = pneg %p55
        $region38: #{tpu_custom_call.1} parent=35 // pred_check_branch
          %266 = sbr.rel (%p264) target = $region40
        $region39: #{tpu_custom_call.1} parent=35 // pred_region
          %s267 = sand.u32 %s45, 1
          %s268 = scalar_lea.sflag [#allocation4], %s267
          %s269 = sand.u32 %s45, 1
          %s270 = smul.addr %s269, 8
          %s271 = scalar_lea.vmem [#allocation3], %s270
          %s273 = ssub.s32 128, 128
          %274 = vsyncadd %s268, %s273
          %s275 = sadd.s32 %s29, %s28
          %s276 = smul.addr %s275, 128
          %s277 = scalar_lea.hbm %s0, %s276
          %s279 = sshll.u32 %s271, 4
          %s280 = int_to_ptr.vmem [resolvable:$true] %s279
          %282 = dma.hbm_to_vmem [thread:$0]  %s277, 128, %s280, %s268
        $region40: #{tpu_custom_call.1} parent=35 // pred_fallthru
          _
        // Predicated region
        $region41: #{tpu_custom_call.1} parent=35 // pred_check
          %p283 = pneg %p81
        $region42: #{tpu_custom_call.1} parent=35 // pred_check_branch
          %285 = sbr.rel (%p283) target = $region44
        $region43: #{tpu_custom_call.1} parent=35 // pred_region
          %p286 = scmp.lt.s32.totalorder %s28, 1
          %s287 = scalar_select %p286, %s28, 1
          %s288 = scalar_lea.vmem %s1, %s287
        $region44: #{tpu_custom_call.1} parent=35 // pred_fallthru
          _
      $region36: #{tpu_custom_call.1} parent=5 // pred_fallthru
        _
      %p289 = scmp.le.s32.totalorder 1, %s21
      %p290 = scmp.lt.s32.totalorder %s21, 3
      %p291 = pnand %p289, %p290
      %p292 = pneg %p291
      // Predicated region
      $region45: #{tpu_custom_call.1} parent=5 // pred_check
        _
      $region46: #{tpu_custom_call.1} parent=5 // pred_check_branch
        %294 = sbr.rel (%p291) target = $region48
      $region47: #{tpu_custom_call.1} parent=5 // pred_region
        %s295 = ssub.s32 %s21, 1
        %s296 = sand.u32 %s48, 1
        %s297 = scalar_lea.sflag [#allocation4], %s296
        %s298 = sand.u32 %s48, 1
        %s299 = smul.addr %s298, 8
        %s300 = scalar_lea.vmem [#allocation3], %s299
        // Predicated region
        $region49: #{tpu_custom_call.1} parent=47 // pred_check
          %p301 = pneg %p61
        $region50: #{tpu_custom_call.1} parent=47 // pred_check_branch
          %303 = sbr.rel (%p301) target = $region52
        $region51: #{tpu_custom_call.1} parent=47 // pred_region
          %304 = dma.done %s297, 128
        $region52: #{tpu_custom_call.1} parent=47 // pred_fallthru
          _
        // Predicated region
        $region53: #{tpu_custom_call.1} parent=47 // pred_check
          %p305 = pneg %p108
        $region54: #{tpu_custom_call.1} parent=47 // pred_check_branch
          %307 = sbr.rel (%p305) target = $region56
        $region55: #{tpu_custom_call.1} parent=47 // pred_region
          %308 = dma.done [#allocation7], 256
        $region56: #{tpu_custom_call.1} parent=47 // pred_fallthru
          _
        %s309 = sand.u32 %s48, 1
        %s310 = scalar_lea.sflag [#allocation4], %s309
        %s311 = sand.u32 %s48, 1
        %s312 = smul.addr %s311, 8
        %s313 = scalar_lea.vmem [#allocation3], %s312
        %p314 = pneg %p61
        %p315 = pneg %p58
        %p316 = scmp.lt.s32.totalorder %s30, 1
        %s317 = scalar_select %p316, %s30, 1
        %s318 = scalar_lea.vmem %s1, %s317
        %p319 = pneg %p87
        %p320 = pneg %p84
        %p321 = pneg %p108
        %p322 = pneg %p105
        %p323 = pneg %p129
        %p324 = pneg %p126
        %p325 = pneg %p150
        %p326 = pneg %p147
        %p327 = pneg %p171
        %p328 = pneg %p168
        %p329 = pneg %p192
        %p330 = pneg %p189
        %p331 = pneg %p220
        %p332 = pneg %p217
        %s333 = sand.u32 %s207, 1
        %s334 = scalar_lea.sflag [#allocation5], %s333
        %s335 = sand.u32 %s207, 1
        %s336 = scalar_lea.vmem [#allocation8], %s335
        %p337 = scmp.lt.s32.totalorder %s30, 1
        %s338 = scalar_select %p337, %s30, 1
        %s339 = scalar_lea.vmem %s1, %s338
        %v340 = vld [vmem:[%s300] sm:$0xff]
        %v341 = vld [vmem:[#allocation6] sm:$0xff]
        %v342 = vld [vmem:[#allocation6 + $0x8] sm:$0xff]
        %v343 = vld [vmem:[%s339] sm:$0x1]
        %v345 = vlaneseq
        %v346 = vshrl.u32 %v345, 7
        %v347 = vsub.s32 0, %v346
        %v348 = vrot.slane %v343, %v347
        %vm350 = vcmask 130048
        %v352 = vsel %vm350, %v340, 0
        %354 = vmatprep.subr.mxu0 0.0
        %355 = vmatpush1.msra.mxu0 %v341
        %356 = vmatprep.subr.mxu0 0.0
        %357 = vmatpush1.msra.mxu0 %v342
        %358 = vmatprep.subr.mxu0 0.0
        %359 = vmatpush1.msra.mxu0 0.0
        %360 = vmatprep.subr.mxu0 0.0
        %361 = vmatpush1.msra.mxu0 0.0
        %362 = vmatprep.subr.mxu0 0.0
        %363 = vmatpush1.msra.mxu0 0.0
        %364 = vmatprep.subr.mxu0 0.0
        %365 = vmatpush1.msra.mxu0 0.0
        %366 = vmatprep.subr.mxu0 0.0
        %367 = vmatpush1.msra.mxu0 0.0
        %368 = vmatprep.subr.mxu0 0.0
        %369 = vmatpush1.msra.mxu0 0.0
        %370 = vmatprep.subr.mxu0 0.0
        %371 = vmatpush1.msra.mxu0 0.0
        %372 = vmatprep.subr.mxu0 0.0
        %373 = vmatpush1.msra.mxu0 0.0
        %374 = vmatprep.subr.mxu0 0.0
        %375 = vmatpush1.msra.mxu0 0.0
        %376 = vmatprep.subr.mxu0 0.0
        %377 = vmatpush1.msra.mxu0 0.0
        %378 = vmatprep.subr.mxu0 0.0
        %379 = vmatpush1.msra.mxu0 0.0
        %380 = vmatprep.subr.mxu0 0.0
        %381 = vmatpush1.msra.mxu0 0.0
        %382 = vmatprep.subr.mxu0 0.0
        %383 = vmatpush1.msra.mxu0 0.0
        %384 = vmatprep.subr.mxu0 0.0
        %385 = vmatpush1.msra.mxu0 0.0
        %386 = vmatprep.subr.mxu0 0.0
        %387 = vmatpush1.msra.mxu0 0.0
        %388 = vmatprep.subr.mxu0 0.0
        %389 = vmatpush1.msra.mxu0 0.0
        %390 = vmatprep.subr.mxu0 0.0
        %391 = vmatpush1.msra.mxu0 0.0
        %392 = vmatprep.subr.mxu0 0.0
        %393 = vmatpush1.msra.mxu0 0.0
        %394 = vmatprep.subr.mxu0 0.0
        %395 = vmatpush1.msra.mxu0 0.0
        %396 = vmatprep.subr.mxu0 0.0
        %397 = vmatpush1.msra.mxu0 0.0
        %398 = vmatprep.subr.mxu0 0.0
        %399 = vmatpush1.msra.mxu0 0.0
        %400 = vmatprep.subr.mxu0 0.0
        %401 = vmatpush1.msra.mxu0 0.0
        %402 = vmatprep.subr.mxu0 0.0
        %403 = vmatpush1.msra.mxu0 0.0
        %404 = vmatprep.subr.mxu0 0.0
        %405 = vmatpush1.msra.mxu0 0.0
        %406 = vmatprep.subr.mxu0 0.0
        %407 = vmatpush1.msra.mxu0 0.0
        %408 = vmatprep.subr.mxu0 0.0
        %409 = vmatpush1.msra.mxu0 0.0
        %410 = vmatprep.subr.mxu0 0.0
        %411 = vmatpush1.msra.mxu0 0.0
        %412 = vmatprep.subr.mxu0 0.0
        %413 = vmatpush1.msra.mxu0 0.0
        %414 = vmatprep.subr.mxu0 0.0
        %415 = vmatpush1.msra.mxu0 0.0
        %416 = vmatprep.subr.mxu0 0.0
        %417 = vmatpush1.msra.mxu0 0.0
        %418 = vmatprep.mubr.f32.mxu0 0.0
        %419 = vmatmul.mubr.f32.gmra.mrb[0].mxu0 %v352
        %v420 = vpop.f32.mrb[0].mxu0
        %v421 = vadd.f32 %v348, %v420
        %v422 = vpop.f32.mrb[0].mxu0
        %423 = vdwg.mxu0
        %vm424 = vcmask 261120
        %v425 = vsel %vm424, %v421, 0.0
        %426 = vadd.xlane.f32.xlu0 %v425
        %v427 = vpop.xlane.xlu0 %426
        %v428 = vrcp.pop 32.0
        %v429 = vmul.f32 %v427, %v428
        %v430 = vsub.f32 %v421, %v429
        %v431 = vmul.f32 %v430, %v430
        %v432 = vsel %vm424, %v431, 0.0
        %433 = vadd.xlane.f32.xlu0 %v432
        %v434 = vpop.xlane.xlu0 %433
        %v435 = vmul.f32 %v434, %v428
        %v436 = vadd.f32 %v435, 1e-05
        %v437 = vrsqrt.pop %v436
        %v438 = vmul.f32 %v430, %v437
        %v439 = vld [vmem:[%s3] sm:$0x1]
        %v441 = vlaneseq
        %v442 = vshrl.u32 %v441, 7
        %v443 = vsub.s32 0, %v442
        %v444 = vrot.slane %v439, %v443
        %v446 = vmul.f32 %v438, %v444
        %v447 = vld [vmem:[%s4] sm:$0x1]
        %v449 = vlaneseq
        %v450 = vshrl.u32 %v449, 7
        %v451 = vsub.s32 0, %v450
        %v452 = vrot.slane %v447, %v451
        %v454 = vadd.f32 %v446, %v452
        %v455 = vmul.f32 %v454, 0.5
        %v456 = vmul.f32 %v454, 0.70710677
        %v457 = verf.f32.pop %v456
        %v458 = vadd.f32 %v457, 1.0
        %v459 = vmul.f32 %v455, %v458
        %v460 = vld [vmem:[%s5] sm:$0x1]
        %s461 = sld [smem:[#allocation2]]
        %v462 = vstv %s461
        %v464 = vsel %vm424, %v460, 0
        %v467 = vsel %vm424, %v459, 0
        %469 = vmatprep.subr.mxu0 0.0
        %470 = vmatpush1.xpose.msra.mxu0 %v467
        %471 = vmatprep.subr.mxu0 0.0
        %472 = vmatpush1.xpose.msra.mxu0 0.0
        %473 = vmatprep.subr.mxu0 0.0
        %474 = vmatpush1.xpose.msra.mxu0 0.0
        %475 = vmatprep.subr.mxu0 0.0
        %476 = vmatpush1.xpose.msra.mxu0 0.0
        %477 = vmatprep.subr.mxu0 0.0
        %478 = vmatpush1.xpose.msra.mxu0 0.0
        %479 = vmatprep.subr.mxu0 0.0
        %480 = vmatpush1.xpose.msra.mxu0 0.0
        %481 = vmatprep.subr.mxu0 0.0
        %482 = vmatpush1.xpose.msra.mxu0 0.0
        %483 = vmatprep.subr.mxu0 0.0
        %484 = vmatpush1.xpose.msra.mxu0 0.0
        %485 = vmatprep.subr.mxu0 0.0
        %486 = vmatpush1.xpose.msra.mxu0 0.0
        %487 = vmatprep.subr.mxu0 0.0
        %488 = vmatpush1.xpose.msra.mxu0 0.0
        %489 = vmatprep.subr.mxu0 0.0
        %490 = vmatpush1.xpose.msra.mxu0 0.0
        %491 = vmatprep.subr.mxu0 0.0
        %492 = vmatpush1.xpose.msra.mxu0 0.0
        %493 = vmatprep.subr.mxu0 0.0
        %494 = vmatpush1.xpose.msra.mxu0 0.0
        %495 = vmatprep.subr.mxu0 0.0
        %496 = vmatpush1.xpose.msra.mxu0 0.0
        %497 = vmatprep.subr.mxu0 0.0
        %498 = vmatpush1.xpose.msra.mxu0 0.0
        %499 = vmatprep.subr.mxu0 0.0
        %500 = vmatpush1.xpose.msra.mxu0 0.0
        %501 = vmatprep.subr.mxu0 0.0
        %502 = vmatpush1.xpose.msra.mxu0 0.0
        %503 = vmatprep.subr.mxu0 0.0
        %504 = vmatpush1.xpose.msra.mxu0 0.0
        %505 = vmatprep.subr.mxu0 0.0
        %506 = vmatpush1.xpose.msra.mxu0 0.0
        %507 = vmatprep.subr.mxu0 0.0
        %508 = vmatpush1.xpose.msra.mxu0 0.0
        %509 = vmatprep.subr.mxu0 0.0
        %510 = vmatpush1.xpose.msra.mxu0 0.0
        %511 = vmatprep.subr.mxu0 0.0
        %512 = vmatpush1.xpose.msra.mxu0 0.0
        %513 = vmatprep.subr.mxu0 0.0
        %514 = vmatpush1.xpose.msra.mxu0 0.0
        %515 = vmatprep.subr.mxu0 0.0
        %516 = vmatpush1.xpose.msra.mxu0 0.0
        %517 = vmatprep.subr.mxu0 0.0
        %518 = vmatpush1.xpose.msra.mxu0 0.0
        %519 = vmatprep.subr.mxu0 0.0
        %520 = vmatpush1.xpose.msra.mxu0 0.0
        %521 = vmatprep.subr.mxu0 0.0
        %522 = vmatpush1.xpose.msra.mxu0 0.0
        %523 = vmatprep.subr.mxu0 0.0
        %524 = vmatpush1.xpose.msra.mxu0 0.0
        %525 = vmatprep.subr.mxu0 0.0
        %526 = vmatpush1.xpose.msra.mxu0 0.0
        %527 = vmatprep.subr.mxu0 0.0
        %528 = vmatpush1.xpose.msra.mxu0 0.0
        %529 = vmatprep.subr.mxu0 0.0
        %530 = vmatpush1.xpose.msra.mxu0 0.0
        %531 = vmatprep.subr.mxu0 0.0
        %532 = vmatpush1.xpose.msra.mxu0 0.0
        %533 = vmatprep.mubr.f32.mxu0 0.0
        %534 = vmatmul.mubr.f32.gmra.mrb[0].mxu0 %v464
        %v535 = vpop.f32.mrb[0].mxu0
        %v536 = vadd.f32 %v462, %v535
        %v537 = vpop.f32.mrb[0].mxu0
        %538 = vdwg.mxu0
        %vm539 = vcmask 57344
        %540 = vst.msk [vmem:[%s336] sm:$0x1] %vm539, %v536
        %s541 = sand.u32 %s207, 1
        %s542 = scalar_lea.sflag [#allocation5], %s541
        %s543 = sand.u32 %s207, 1
        %s544 = scalar_lea.vmem [#allocation8], %s543
        // Predicated region
        $region57: #{tpu_custom_call.1} parent=47 // pred_check
          %p545 = pneg %p217
        $region58: #{tpu_custom_call.1} parent=47 // pred_check_branch
          %547 = sbr.rel (%p545) target = $region60
        $region59: #{tpu_custom_call.1} parent=47 // pred_region
          %s549 = ssub.s32 16, 16
          %550 = vsyncadd %s542, %s549
          %s551 = sadd.s32 %s31, %s30
          %s552 = smul.addr %s551, 16
          %s553 = scalar_lea.hbm %s7, %s552
          %s555 = sshll.u32 %s544, 4
          %s556 = int_to_ptr.vmem [resolvable:$true] %s555
          %558 = dma.vmem_to_hbm [thread:$0]  %s556, 16, %s553, %s542
        $region60: #{tpu_custom_call.1} parent=47 // pred_fallthru
          _
      $region48: #{tpu_custom_call.1} parent=5 // pred_fallthru
        _
      %p559 = scmp.le.s32.totalorder 2, %s21
      // Predicated region
      $region61: #{tpu_custom_call.1} parent=5 // pred_check
        %p560 = pneg %p559
      $region62: #{tpu_custom_call.1} parent=5 // pred_check_branch
        %562 = sbr.rel (%p560) target = $region64
      $region63: #{tpu_custom_call.1} parent=5 // pred_region
        %s563 = ssub.s32 %s21, 2
        // Predicated region
        $region65: #{tpu_custom_call.1} parent=63 // pred_check
          %p564 = pneg %p223
        $region66: #{tpu_custom_call.1} parent=63 // pred_check_branch
          %566 = sbr.rel (%p564) target = $region68
        $region67: #{tpu_custom_call.1} parent=63 // pred_region
          %s567 = sand.u32 %s208, 1
          %s568 = scalar_lea.sflag [#allocation5], %s567
          %s569 = sand.u32 %s208, 1
          %s570 = scalar_lea.vmem [#allocation8], %s569
          %571 = dma.done %s568, 16
        $region68: #{tpu_custom_call.1} parent=63 // pred_fallthru
          _
      $region64: #{tpu_custom_call.1} parent=5 // pred_fallthru
        _
    $region6: #{tpu_custom_call.1} parent=1 // loop_footer
      %s25 = sadd.s32 1, %s21
    $region7: #{tpu_custom_call.1} parent=1 // loop_footer_branch
      %20 = sbr.rel target = $region3
    $region8: #{tpu_custom_call.1} parent=1 // loop_exit
      _
    %572 = vsyncpa [#allocation4], 1
    %s573 = scalar_lea.sflag [#allocation4], 1
    %574 = vsyncpa %s573, 1
    %575 = vsyncpa [#allocation7], 1
    %576 = vsyncpa [#allocation5], 1
    %s577 = scalar_lea.sflag [#allocation5], 1
    %578 = vsyncpa %s577, 1

</llo_original>
